<compile_context>
chip_gen: v5e
topology: v5e:2x2
jax: 0.10.0
libtpu: 0.0.40
codegen_flags: <defaults>
</compile_context>

<pallas_src>
import functools

import jax
import jax.numpy as jnp
from jax.experimental import pallas as pl
from jax.experimental.pallas import tpu as pltpu

EPS = 1e-5            # torch.nn.BatchNorm1d default eps
_SLAB_COLS = 128      # one lane-width; max (fin_p + 1) here is 17 << 128
_MAX_TILE_N = 32768   # batch-lanes per grid step (~8 MiB VMEM incl. double-buffers)
_DEFAULT_DIMS = ((3, 4), (4, 8), (8, 16), (16, 1))   # (fin, fout) per layer


def _round_up(v, m):
    return (v + m - 1) // m * m


def _layer_layout(dims):
    """Padded per-layer dims, slab row offsets, total slab rows."""
    pdims, offs, r = [], [], 0
    for fin, fout in dims:
        pdims.append((_round_up(fin, 8), _round_up(fout, 8)))
        offs.append(r)
        r += pdims[-1][1]
    return tuple(pdims), tuple(offs), _round_up(r, 8)


# --------------------------------------------------------------------------- #
# Kernel
# --------------------------------------------------------------------------- #
def cars_mlp_kernel(x_ref, p_ref, o_ref, *, pdims, row_offs):
    """x_ref: (fin0_p, TILE_N) batch-on-lanes input tile (features zero-padded).
    p_ref: (slab_rows, 128) packed folded params; layer L occupies rows
           row_offs[L] : row_offs[L]+fout_p with [ W.T (padded) | bias col @ fin_p ].
    o_ref: (1, TILE_N) lane-dense sigmoid output."""
    p = p_ref[...]
    h = x_ref[...]                                   # (fin_p, TILE_N)
    n_layers = len(pdims)
    for li, ((fin_p, fout_p), row) in enumerate(zip(pdims, row_offs)):
        w = p[row:row + fout_p, :fin_p]              # (fout_p, fin_p), 8-aligned rows
        b = p[row:row + fout_p, fin_p:fin_p + 1]     # (fout_p, 1) bias column
        # MXU matmul; padded rows/cols are zero so they contribute nothing.
        acc = jnp.dot(w, h, preferred_element_type=jnp.float32,
                      precision=jax.lax.Precision.HIGHEST) + b
        if li < n_layers - 1:
            # BN folded into W/b on host; Dropout is identity at inference.
            h = jnp.maximum(acc, 0.0)
        else:
            # sigmoid(z) = 0.5 * (tanh(z/2) + 1): stable, runs on the EUP.
            o_ref[...] = 0.5 * (jnp.tanh(0.5 * acc[:o_ref.shape[0], :]) + 1.0)
    # TODO(synk): training-mode dropout would use pltpu.prng_seed +
    # pltpu.stateful_bernoulli inside the kernel; inference keeps it identity.


# --------------------------------------------------------------------------- #
# Host-side param folding / packing (call ONCE at weight-load time)
# --------------------------------------------------------------------------- #
def prepare_cars_params(params, dims=_DEFAULT_DIMS):
    """Fold eval-mode BatchNorm into the preceding Linear (W' = W*scale,
    b' = (b-mean)*scale+beta, scale = gamma*rsqrt(var+eps)) and pack all layers
    into one (slab_rows, 128) f32 slab.  Accepts Linear weights as (fin, fout)
    or PyTorch-style (fout, fin); they are normalised here.
    params layout: [W, b, gamma, beta, mean, var] x 3  +  [W, b]."""
    layers, idx = [], 0
    for li in range(len(dims)):
        w, b = params[idx], params[idx + 1]
        idx += 2
        bn = None
        if li < len(dims) - 1:
            bn = tuple(params[idx:idx + 4])
            idx += 4
        layers.append((w, b, bn))

    pdims, row_offs, slab_rows = _layer_layout(dims)
    slab = jnp.zeros((slab_rows, _SLAB_COLS), jnp.float32)
    for (fin, fout), (fin_p, _), row, (w, b, bn) in zip(dims, pdims, row_offs, layers):
        w = jnp.asarray(w, jnp.float32)
        if w.shape == (fout, fin) and fin != fout:   # torch nn.Linear orientation
            w = w.T
        assert w.shape == (fin, fout), (w.shape, (fin, fout))
        b = jnp.asarray(b, jnp.float32).reshape(fout)
        if bn is not None:
            gamma, beta, mean, var = (jnp.asarray(a, jnp.float32).reshape(fout) for a in bn)
            scale = gamma * jax.lax.rsqrt(var + EPS)
            w = w * scale[None, :]
            b = (b - mean) * scale + beta
        slab = slab.at[row:row + fout, :fin].set(w.T)   # W.T; padded region stays 0
        slab = slab.at[row:row + fout, fin_p].set(b)    # bias column at col fin_p
    return slab


# --------------------------------------------------------------------------- #
# Per-call forward (only layout + pallas_call)
# --------------------------------------------------------------------------- #
def cars_model_forward(x, slab, dims=_DEFAULT_DIMS):
    """x: (N, features_in) float32.  slab: output of prepare_cars_params."""
    n, fin0 = x.shape
    assert fin0 == dims[0][0], (fin0, dims[0][0])
    pdims, row_offs, slab_rows = _layer_layout(dims)
    fin0_p = pdims[0][0]
    fout_last = dims[-1][1]

    # Batch on the lane axis: pad features -> fin0_p and batch -> multiple of 128
    # with a single fused pad+transpose (one HBM pass under jit).  Upstream code
    # that already has (features, N) layout could skip this entirely.
    n_pad = _round_up(n, 128)
    x_t = jnp.pad(x.astype(jnp.float32), ((0, n_pad - n), (0, fin0_p - fin0))).T

    # Large lane tiles to amortise per-grid-step overhead, but keep >=2 tiles for
    # big batches so the "parallel" axis shards across both v7x TensorCores.
    tile_n = min(_MAX_TILE_N, max(128, _round_up(pl.cdiv(n_pad, 2), 128)))
    grid_n = pl.cdiv(n_pad, tile_n)   # partial last tile handled by BlockSpec masking

    kernel = functools.partial(cars_mlp_kernel, pdims=pdims, row_offs=row_offs)

    out = pl.pallas_call(
        kernel,
        out_shape=jax.ShapeDtypeStruct((fout_last, n_pad), jnp.float32),
        grid=(grid_n,),
        in_specs=[
            pl.BlockSpec((fin0_p, tile_n), lambda i: (0, i)),            # x tile (pipelined)
            pl.BlockSpec((slab_rows, _SLAB_COLS), lambda i: (0, 0)),     # param slab (resident)
        ],
        out_specs=pl.BlockSpec((fout_last, tile_n), lambda i: (0, i)),   # lane-dense store
        compiler_params=pltpu.CompilerParams(
            dimension_semantics=("parallel",),    # shard batch tiles across TCs (v7x)
            vmem_limit_bytes=32 * 1024 * 1024,    # safe on v5e/v6e/v7x
        ),
    )(x_t, slab)

    return out[:, :n].T   # (N, features_out); padded/garbage lanes sliced off


# --------------------------------------------------------------------------- #
# Synthetic params + plain-JAX reference (eval-mode, unfolded)
# --------------------------------------------------------------------------- #
def init_params(key, features_in=3, h1=4, h2=8, h3=16, features_out=1):
    dims = [(features_in, h1), (h1, h2), (h2, h3), (h3, features_out)]
    keys = jax.random.split(key, len(dims))
    params = []
    for i, (fin, fout) in enumerate(dims):
        kw, kb, kbn = jax.random.split(keys[i], 3)
        bound = 1.0 / jnp.sqrt(jnp.float32(fin))
        w = jax.random.uniform(kw, (fin, fout), jnp.float32, -bound, bound)
        b = jax.random.uniform(kb, (fout,), jnp.float32, -bound, bound)
        params.extend([w, b])
        if i < len(dims) - 1:  # BN after fc1/fc2/fc3 only
            k1, k2, k3, k4 = jax.random.split(kbn, 4)
            gamma = jax.random.uniform(k1, (fout,), jnp.float32, 0.5, 1.5)
            beta = 0.1 * jax.random.normal(k2, (fout,), jnp.float32)
            run_mean = 0.1 * jax.random.normal(k3, (fout,), jnp.float32)
            run_var = jax.random.uniform(k4, (fout,), jnp.float32, 0.5, 1.5)
            params.extend([gamma, beta, run_mean, run_var])
    return tuple(params)


def _bn_eval(h, gamma, beta, mean, var):
    return (h - mean) * jax.lax.rsqrt(var + EPS) * gamma + beta


def reference_forward(x, params):
    (w1, b1, g1, be1, m1, v1,
     w2, b2, g2, be2, m2, v2,
     w3, b3, g3, be3, m3, v3,
     w4, b4) = params
    hp = jax.lax.Precision.HIGHEST
    h = jnp.maximum(_bn_eval(jnp.dot(x, w1, precision=hp) + b1, g1, be1, m1, v1), 0.0)
    h = jnp.maximum(_bn_eval(jnp.dot(h, w2, precision=hp) + b2, g2, be2, m2, v2), 0.0)
    h = jnp.maximum(_bn_eval(jnp.dot(h, w3, precision=hp) + b3, g3, be3, m3, v3), 0.0)
    return jax.nn.sigmoid(jnp.dot(h, w4, precision=hp) + b4)


if __name__ == "__main__":
    key = jax.random.PRNGKey(0)
    k_x, k_p = jax.random.split(key)

    batch = 8
    x = jax.random.normal(k_x, (batch, 3), jnp.float32)
    params = init_params(k_p)

    slab = prepare_cars_params(params)           # fold + pack ONCE (hoisted)
    fwd = jax.jit(cars_model_forward)
    out = jax.block_until_ready(fwd(x, slab))
    ref = reference_forward(x, params)

    assert out.shape == (batch, 1), out.shape
    assert jnp.allclose(out, ref, atol=1e-5, rtol=1e-5), float(
        jnp.max(jnp.abs(out - ref)))
    print("KERNEL_OK")
</pallas_src>

<mosaic_0001>
module attributes {stable_mosaic.version = 11 : i64} {
  func.func @cars_mlp_kernel(%arg0: i32, %arg1: memref<8x128xf32, #tpu.memory_space<vmem>>, %arg2: memref<40x128xf32, #tpu.memory_space<vmem>>, %arg3: memref<1x128xf32, #tpu.memory_space<vmem>>) attributes {dimension_semantics = [#tpu.dimension_semantics<parallel>], iteration_bounds = array<i64: 1>, scalar_prefetch = 0 : i64, scratch_operands = 0 : i64, tpu.core_type = #tpu.core_type<tc>, window_params = [{transform_indices = @transform_0, window_bounds = array<i64: 8, 128>}, {pipeline_mode = #tpu.pipeline_mode<synchronous>, transform_indices = @transform_1, window_bounds = array<i64: 40, 128>}, {transform_indices = @transform_2, window_bounds = array<i64: 1, 128>}]} {
    %c0 = arith.constant 0 : index
    %c0_0 = arith.constant 0 : index
    %0 = vector.load %arg2[%c0, %c0_0] : memref<40x128xf32, #tpu.memory_space<vmem>>, vector<40x128xf32>
    %c0_1 = arith.constant 0 : index
    %c0_2 = arith.constant 0 : index
    %1 = vector.load %arg1[%c0_1, %c0_2] : memref<8x128xf32, #tpu.memory_space<vmem>>, vector<8x128xf32>
    %2 = vector.extract_strided_slice %0 {offsets = [0, 0], sizes = [8, 8], strides = [1, 1]} : vector<40x128xf32> to vector<8x8xf32>
    %3 = vector.extract_strided_slice %0 {offsets = [0, 8], sizes = [8, 1], strides = [1, 1]} : vector<40x128xf32> to vector<8x1xf32>
    %cst = arith.constant dense<0.000000e+00> : vector<8x128xf32>
    %4 = tpu.matmul %2, %1, %cst {dimension_numbers = #tpu.dot_dimension_numbers<[1], [0], [0], [1], [0, 0, 1, 1], [], []>, precision = #tpu.contract_precision<fp32>} : vector<8x8xf32>, vector<8x128xf32>, vector<8x128xf32> -> vector<8x128xf32>
    %5 = vector.broadcast %3 : vector<8x1xf32> to vector<8x128xf32>
    %6 = arith.addf %4, %5 : vector<8x128xf32>
    %cst_3 = arith.constant 0.000000e+00 : f32
    %7 = vector.broadcast %cst_3 : f32 to vector<8x128xf32>
    %8 = arith.maximumf %6, %7 : vector<8x128xf32>
    %9 = vector.extract_strided_slice %0 {offsets = [8, 0], sizes = [8, 8], strides = [1, 1]} : vector<40x128xf32> to vector<8x8xf32>
    %10 = vector.extract_strided_slice %0 {offsets = [8, 8], sizes = [8, 1], strides = [1, 1]} : vector<40x128xf32> to vector<8x1xf32>
    %cst_4 = arith.constant dense<0.000000e+00> : vector<8x128xf32>
    %11 = tpu.matmul %9, %8, %cst_4 {dimension_numbers = #tpu.dot_dimension_numbers<[1], [0], [0], [1], [0, 0, 1, 1], [], []>, precision = #tpu.contract_precision<fp32>} : vector<8x8xf32>, vector<8x128xf32>, vector<8x128xf32> -> vector<8x128xf32>
    %12 = vector.broadcast %10 : vector<8x1xf32> to vector<8x128xf32>
    %13 = arith.addf %11, %12 : vector<8x128xf32>
    %cst_5 = arith.constant 0.000000e+00 : f32
    %14 = vector.broadcast %cst_5 : f32 to vector<8x128xf32>
    %15 = arith.maximumf %13, %14 : vector<8x128xf32>
    %16 = vector.extract_strided_slice %0 {offsets = [16, 0], sizes = [16, 8], strides = [1, 1]} : vector<40x128xf32> to vector<16x8xf32>
    %17 = vector.extract_strided_slice %0 {offsets = [16, 8], sizes = [16, 1], strides = [1, 1]} : vector<40x128xf32> to vector<16x1xf32>
    %cst_6 = arith.constant dense<0.000000e+00> : vector<16x128xf32>
    %18 = tpu.matmul %16, %15, %cst_6 {dimension_numbers = #tpu.dot_dimension_numbers<[1], [0], [0], [1], [0, 0, 1, 1], [], []>, precision = #tpu.contract_precision<fp32>} : vector<16x8xf32>, vector<8x128xf32>, vector<16x128xf32> -> vector<16x128xf32>
    %19 = vector.broadcast %17 : vector<16x1xf32> to vector<16x128xf32>
    %20 = arith.addf %18, %19 : vector<16x128xf32>
    %cst_7 = arith.constant 0.000000e+00 : f32
    %21 = vector.broadcast %cst_7 : f32 to vector<16x128xf32>
    %22 = arith.maximumf %20, %21 : vector<16x128xf32>
    %23 = vector.extract_strided_slice %0 {offsets = [32, 0], sizes = [8, 16], strides = [1, 1]} : vector<40x128xf32> to vector<8x16xf32>
    %24 = vector.extract_strided_slice %0 {offsets = [32, 16], sizes = [8, 1], strides = [1, 1]} : vector<40x128xf32> to vector<8x1xf32>
    %cst_8 = arith.constant dense<0.000000e+00> : vector<8x128xf32>
    %25 = tpu.matmul %23, %22, %cst_8 {dimension_numbers = #tpu.dot_dimension_numbers<[1], [0], [0], [1], [0, 0, 1, 1], [], []>, precision = #tpu.contract_precision<fp32>} : vector<8x16xf32>, vector<16x128xf32>, vector<8x128xf32> -> vector<8x128xf32>
    %26 = vector.broadcast %24 : vector<8x1xf32> to vector<8x128xf32>
    %27 = arith.addf %25, %26 : vector<8x128xf32>
    %28 = vector.extract_strided_slice %27 {offsets = [0, 0], sizes = [1, 128], strides = [1, 1]} : vector<8x128xf32> to vector<1x128xf32>
    %cst_9 = arith.constant 5.000000e-01 : f32
    %29 = vector.broadcast %cst_9 : f32 to vector<1x128xf32>
    %30 = arith.mulf %29, %28 : vector<1x128xf32>
    %31 = math.tanh %30 : vector<1x128xf32>
    %cst_10 = arith.constant 1.000000e+00 : f32
    %32 = vector.broadcast %cst_10 : f32 to vector<1x128xf32>
    %33 = arith.addf %31, %32 : vector<1x128xf32>
    %cst_11 = arith.constant 5.000000e-01 : f32
    %34 = vector.broadcast %cst_11 : f32 to vector<1x128xf32>
    %35 = arith.mulf %34, %33 : vector<1x128xf32>
    %c0_12 = arith.constant 0 : index
    %c0_13 = arith.constant 0 : index
    %36 = vector.load %arg3[%c0_12, %c0_13] : memref<1x128xf32, #tpu.memory_space<vmem>>, vector<1x128xf32>
    tpu.vector_store %arg3[%c0_12, %c0_13], %35 {strides = array<i32>} : memref<1x128xf32, #tpu.memory_space<vmem>>, vector<1x128xf32>,
    return
  }
  func.func @transform_0(%arg0: i32) -> (i32, i32) {
    %c0_i32 = arith.constant 0 : i32
    %c0_i32_0 = arith.constant 0 : i32
    return %c0_i32, %arg0 : i32, i32
  }
  func.func @transform_1(%arg0: i32) -> (i32, i32) {
    %c0_i32 = arith.constant 0 : i32
    %c0_i32_0 = arith.constant 0 : i32
    %c0_i32_1 = arith.constant 0 : i32
    return %c0_i32, %c0_i32_0 : i32, i32
  }
  func.func @transform_2(%arg0: i32) -> (i32, i32) {
    %c0_i32 = arith.constant 0 : i32
    %c0_i32_0 = arith.constant 0 : i32
    return %c0_i32, %arg0 : i32, i32
  }
}

</mosaic_0001>

<llo_original>
// kernel: cars_model_forward.1
$region0: #{cars_model_forward.1}
  #allocation0 [shape = 'u32[]', space=smem, size = 0x4, offset = 0x4, fixed_abs, tag = 'smem constant byte address 0x4 - core index']
  #allocation1 [shape = 'u32[72,128]{1,0:T(1,128)}', space=vmem, size = 0x9000, scoped, tag = 'internal scratch']
  %s0 = inlined_call_operand.vmem [shape: f32[8,128], index: 0, kind: input, shape index: {}]
  %s1 = inlined_call_operand.hbm [shape: f32[40,128], index: 1, kind: input, shape index: {}]
  %s2 = inlined_call_operand.vmem [shape: f32[1,128], index: 2, kind: output, shape index: {}]
  %s3 = sld [smem:[#allocation0]]
  $region22: #{cars_model_forward.1} parent=0
    _
  %s5 = ssub.s32 1, %s3
  %s6 = scalar_select 0, %s5, %s3
  $region1: #{cars_model_forward.1} parent=0
    #allocation2 [shape = 'u8[20480]{0}', space=vmem, size = 0x5000, scoped, tag = 'input window, operand 1, single buffered']
    #allocation3 [shape = 's32[1]{0}', space=sflag, size = 0x4, scoped, tag = 'scoped memory for cars_model_forward.1']
    %7 = vsyncpa [#allocation3], 0
    // Predicated region
    $region2: #{cars_model_forward.1} parent=1 // pred_check
      _
    $region3: #{cars_model_forward.1} parent=1 // pred_check_branch
      %9 = sbr.rel (0) target = $region5
    $region4: #{cars_model_forward.1} parent=1 // pred_region
      _
    $region5: #{cars_model_forward.1} parent=1 // pred_fallthru
      _
    // Predicated region
    $region6: #{cars_model_forward.1} parent=1 // pred_check
      _
    $region7: #{cars_model_forward.1} parent=1 // pred_check_branch
      %11 = sbr.rel (0) target = $region9
    $region8: #{cars_model_forward.1} parent=1 // pred_region
      %13 = vsyncadd [#allocation3], 0
      %s14 = sshll.u32 %s1, 4
      %s15 = int_to_ptr.hbm [resolvable:$true] %s14
      %s16 = sshll.u32 [#allocation2], 4
      %s17 = int_to_ptr.vmem [resolvable:$true] %s16
      %22 = dma.hbm_to_vmem [thread:$0]  %s15, 640, %s17, [#allocation3], 128, 128, 8
    $region9: #{cars_model_forward.1} parent=1 // pred_fallthru
      _
    // Predicated region
    $region10: #{cars_model_forward.1} parent=1 // pred_check
      _
    $region11: #{cars_model_forward.1} parent=1 // pred_check_branch
      %24 = sbr.rel (0) target = $region13
    $region12: #{cars_model_forward.1} parent=1 // pred_region
      %26 = dma.done [#allocation3], 640
    $region13: #{cars_model_forward.1} parent=1 // pred_fallthru
      _
    %v27 = vld [vmem:[#allocation2] sm:$0xff]
    %v28 = vld [vmem:[#allocation2 + $0x8] sm:$0xff]
    %v29 = vld [vmem:[#allocation2 + $0x10] sm:$0xff]
    %v30 = vld [vmem:[#allocation2 + $0x18] sm:$0xff]
    %v31 = vld [vmem:[#allocation2 + $0x20] sm:$0xff]
    %v32 = vld [vmem:[%s0] sm:$0xff]
    %34 = vset.pattern.permute.xlu0 8
    %35 = vperm.xlu0 %34, %v27
    %v36 = vpop.permute.xlu0 %35
    %vm38 = vcmask 64512
    %v39 = vsel %vm38, %v27, 0
    %41 = vmatpush.msra.mxu0 0.0
    %42 = vmatpush.msra.mxu0 0.0
    %43 = vmatpush.msra.mxu0 0.0
    %44 = vmatpush.msra.mxu0 0.0
    %45 = vmatpush.msra.mxu0 0.0
    %46 = vmatpush.msra.mxu0 0.0
    %47 = vmatpush.msra.mxu0 0.0
    %48 = vmatpush.msra.mxu0 0.0
    %49 = vmatpush.msra.mxu0 0.0
    %50 = vmatpush.msra.mxu0 0.0
    %51 = vmatpush.msra.mxu0 0.0
    %52 = vmatpush.msra.mxu0 0.0
    %53 = vmatpush.msra.mxu0 0.0
    %54 = vmatpush.msra.mxu0 0.0
    %55 = vmatpush.msra.mxu0 0.0
    %v56 = vand.u32 %v32, 4294901760
    %57 = vmatpush.msra.mxu0 %v56
    %v58 = vand.u32 %v39, 4294901760
    %v59 = vsub.f32 %v39, %v58
    %v60 = vand.u32 %v59, 4294901760
    %v61 = vsub.f32 %v59, %v60
    %v62 = vand.u32 %v61, 4294901760
    %63 = vmatmul.f32.gmra.mxu0 %v62
    %v64 = vpop.f32.mrf.mxu0
    %v65 = vadd.f32 %v36, %v64
    %66 = vdwg.mxu0
    %67 = vmatpush.msra.mxu0 0.0
    %68 = vmatpush.msra.mxu0 0.0
    %69 = vmatpush.msra.mxu0 0.0
    %70 = vmatpush.msra.mxu0 0.0
    %71 = vmatpush.msra.mxu0 0.0
    %72 = vmatpush.msra.mxu0 0.0
    %73 = vmatpush.msra.mxu0 0.0
    %74 = vmatpush.msra.mxu0 0.0
    %75 = vmatpush.msra.mxu0 0.0
    %76 = vmatpush.msra.mxu0 0.0
    %77 = vmatpush.msra.mxu0 0.0
    %78 = vmatpush.msra.mxu0 0.0
    %79 = vmatpush.msra.mxu0 0.0
    %80 = vmatpush.msra.mxu0 0.0
    %81 = vmatpush.msra.mxu0 0.0
    %v82 = vand.u32 %v32, 4294901760
    %v83 = vsub.f32 %v32, %v82
    %v84 = vand.u32 %v83, 4294901760
    %v85 = vsub.f32 %v83, %v84
    %v86 = vand.u32 %v85, 4294901760
    %87 = vmatpush.msra.mxu0 %v86
    %v88 = vand.u32 %v39, 4294901760
    %89 = vmatmul.f32.gmra.mxu0 %v88
    %v90 = vpop.f32.mrf.mxu0
    %v91 = vadd.f32 %v65, %v90
    %92 = vdwg.mxu0
    %93 = vmatpush.msra.mxu0 0.0
    %94 = vmatpush.msra.mxu0 0.0
    %95 = vmatpush.msra.mxu0 0.0
    %96 = vmatpush.msra.mxu0 0.0
    %97 = vmatpush.msra.mxu0 0.0
    %98 = vmatpush.msra.mxu0 0.0
    %99 = vmatpush.msra.mxu0 0.0
    %100 = vmatpush.msra.mxu0 0.0
    %101 = vmatpush.msra.mxu0 0.0
    %102 = vmatpush.msra.mxu0 0.0
    %103 = vmatpush.msra.mxu0 0.0
    %104 = vmatpush.msra.mxu0 0.0
    %105 = vmatpush.msra.mxu0 0.0
    %106 = vmatpush.msra.mxu0 0.0
    %107 = vmatpush.msra.mxu0 0.0
    %v108 = vand.u32 %v32, 4294901760
    %v109 = vsub.f32 %v32, %v108
    %110 = vmatpush.msra.mxu0 %v109
    %v111 = vand.u32 %v39, 4294901760
    %v112 = vsub.f32 %v39, %v111
    %113 = vmatmul.f32.gmra.mxu0 %v112
    %v114 = vpop.f32.mrf.mxu0
    %v115 = vadd.f32 %v91, %v114
    %116 = vdwg.mxu0
    %117 = vmatpush.msra.mxu0 0.0
    %118 = vmatpush.msra.mxu0 0.0
    %119 = vmatpush.msra.mxu0 0.0
    %120 = vmatpush.msra.mxu0 0.0
    %121 = vmatpush.msra.mxu0 0.0
    %122 = vmatpush.msra.mxu0 0.0
    %123 = vmatpush.msra.mxu0 0.0
    %124 = vmatpush.msra.mxu0 0.0
    %125 = vmatpush.msra.mxu0 0.0
    %126 = vmatpush.msra.mxu0 0.0
    %127 = vmatpush.msra.mxu0 0.0
    %128 = vmatpush.msra.mxu0 0.0
    %129 = vmatpush.msra.mxu0 0.0
    %130 = vmatpush.msra.mxu0 0.0
    %131 = vmatpush.msra.mxu0 0.0
    %v132 = vand.u32 %v32, 4294901760
    %133 = vmatpush.msra.mxu0 %v132
    %v134 = vand.u32 %v39, 4294901760
    %v135 = vsub.f32 %v39, %v134
    %v136 = vand.u32 %v135, 4294901760
    %137 = vmatmul.f32.gmra.mxu0 %v136
    %v138 = vpop.f32.mrf.mxu0
    %v139 = vadd.f32 %v115, %v138
    %140 = vdwg.mxu0
    %141 = vmatpush.msra.mxu0 0.0
    %142 = vmatpush.msra.mxu0 0.0
    %143 = vmatpush.msra.mxu0 0.0
    %144 = vmatpush.msra.mxu0 0.0
    %145 = vmatpush.msra.mxu0 0.0
    %146 = vmatpush.msra.mxu0 0.0
    %147 = vmatpush.msra.mxu0 0.0
    %148 = vmatpush.msra.mxu0 0.0
    %149 = vmatpush.msra.mxu0 0.0
    %150 = vmatpush.msra.mxu0 0.0
    %151 = vmatpush.msra.mxu0 0.0
    %152 = vmatpush.msra.mxu0 0.0
    %153 = vmatpush.msra.mxu0 0.0
    %154 = vmatpush.msra.mxu0 0.0
    %155 = vmatpush.msra.mxu0 0.0
    %v156 = vand.u32 %v32, 4294901760
    %v157 = vsub.f32 %v32, %v156
    %v158 = vand.u32 %v157, 4294901760
    %159 = vmatpush.msra.mxu0 %v158
    %v160 = vand.u32 %v39, 4294901760
    %161 = vmatmul.f32.gmra.mxu0 %v160
    %v162 = vpop.f32.mrf.mxu0
    %v163 = vadd.f32 %v139, %v162
    %164 = vdwg.mxu0
    %165 = vmatpush.msra.mxu0 0.0
    %166 = vmatpush.msra.mxu0 0.0
    %167 = vmatpush.msra.mxu0 0.0
    %168 = vmatpush.msra.mxu0 0.0
    %169 = vmatpush.msra.mxu0 0.0
    %170 = vmatpush.msra.mxu0 0.0
    %171 = vmatpush.msra.mxu0 0.0
    %172 = vmatpush.msra.mxu0 0.0
    %173 = vmatpush.msra.mxu0 0.0
    %174 = vmatpush.msra.mxu0 0.0
    %175 = vmatpush.msra.mxu0 0.0
    %176 = vmatpush.msra.mxu0 0.0
    %177 = vmatpush.msra.mxu0 0.0
    %178 = vmatpush.msra.mxu0 0.0
    %179 = vmatpush.msra.mxu0 0.0
    %v180 = vand.u32 %v32, 4294901760
    %181 = vmatpush.msra.mxu0 %v180
    %v182 = vand.u32 %v39, 4294901760
    %183 = vmatmul.f32.gmra.mxu0 %v182
    %v184 = vpop.f32.mrf.mxu0
    %v185 = vadd.f32 %v163, %v184
    %186 = vdwg.mxu0
    %v187 = vmax.f32 %v185, 0.0
    %189 = vset.pattern.permute.xlu0 8
    %190 = vperm.xlu0 %189, %v28
    %v191 = vpop.permute.xlu0 %190
    %v193 = vsel %vm38, %v28, 0
    %195 = vmatpush.msra.mxu0 0.0
    %196 = vmatpush.msra.mxu0 0.0
    %197 = vmatpush.msra.mxu0 0.0
    %198 = vmatpush.msra.mxu0 0.0
    %199 = vmatpush.msra.mxu0 0.0
    %200 = vmatpush.msra.mxu0 0.0
    %201 = vmatpush.msra.mxu0 0.0
    %202 = vmatpush.msra.mxu0 0.0
    %203 = vmatpush.msra.mxu0 0.0
    %204 = vmatpush.msra.mxu0 0.0
    %205 = vmatpush.msra.mxu0 0.0
    %206 = vmatpush.msra.mxu0 0.0
    %207 = vmatpush.msra.mxu0 0.0
    %208 = vmatpush.msra.mxu0 0.0
    %209 = vmatpush.msra.mxu0 0.0
    %v210 = vand.u32 %v187, 4294901760
    %211 = vmatpush.msra.mxu0 %v210
    %v212 = vand.u32 %v193, 4294901760
    %v213 = vsub.f32 %v193, %v212
    %v214 = vand.u32 %v213, 4294901760
    %v215 = vsub.f32 %v213, %v214
    %v216 = vand.u32 %v215, 4294901760
    %217 = vmatmul.f32.gmra.mxu0 %v216
    %v218 = vpop.f32.mrf.mxu0
    %v219 = vadd.f32 %v191, %v218
    %220 = vdwg.mxu0
    %221 = vmatpush.msra.mxu0 0.0
    %222 = vmatpush.msra.mxu0 0.0
    %223 = vmatpush.msra.mxu0 0.0
    %224 = vmatpush.msra.mxu0 0.0
    %225 = vmatpush.msra.mxu0 0.0
    %226 = vmatpush.msra.mxu0 0.0
    %227 = vmatpush.msra.mxu0 0.0
    %228 = vmatpush.msra.mxu0 0.0
    %229 = vmatpush.msra.mxu0 0.0
    %230 = vmatpush.msra.mxu0 0.0
    %231 = vmatpush.msra.mxu0 0.0
    %232 = vmatpush.msra.mxu0 0.0
    %233 = vmatpush.msra.mxu0 0.0
    %234 = vmatpush.msra.mxu0 0.0
    %235 = vmatpush.msra.mxu0 0.0
    %v236 = vand.u32 %v187, 4294901760
    %v237 = vsub.f32 %v187, %v236
    %v238 = vand.u32 %v237, 4294901760
    %v239 = vsub.f32 %v237, %v238
    %v240 = vand.u32 %v239, 4294901760
    %241 = vmatpush.msra.mxu0 %v240
    %v242 = vand.u32 %v193, 4294901760
    %243 = vmatmul.f32.gmra.mxu0 %v242
    %v244 = vpop.f32.mrf.mxu0
    %v245 = vadd.f32 %v219, %v244
    %246 = vdwg.mxu0
    %247 = vmatpush.msra.mxu0 0.0
    %248 = vmatpush.msra.mxu0 0.0
    %249 = vmatpush.msra.mxu0 0.0
    %250 = vmatpush.msra.mxu0 0.0
    %251 = vmatpush.msra.mxu0 0.0
    %252 = vmatpush.msra.mxu0 0.0
    %253 = vmatpush.msra.mxu0 0.0
    %254 = vmatpush.msra.mxu0 0.0
    %255 = vmatpush.msra.mxu0 0.0
    %256 = vmatpush.msra.mxu0 0.0
    %257 = vmatpush.msra.mxu0 0.0
    %258 = vmatpush.msra.mxu0 0.0
    %259 = vmatpush.msra.mxu0 0.0
    %260 = vmatpush.msra.mxu0 0.0
    %261 = vmatpush.msra.mxu0 0.0
    %v262 = vand.u32 %v187, 4294901760
    %v263 = vsub.f32 %v187, %v262
    %264 = vmatpush.msra.mxu0 %v263
    %v265 = vand.u32 %v193, 4294901760
    %v266 = vsub.f32 %v193, %v265
    %267 = vmatmul.f32.gmra.mxu0 %v266
    %v268 = vpop.f32.mrf.mxu0
    %v269 = vadd.f32 %v245, %v268
    %270 = vdwg.mxu0
    %271 = vmatpush.msra.mxu0 0.0
    %272 = vmatpush.msra.mxu0 0.0
    %273 = vmatpush.msra.mxu0 0.0
    %274 = vmatpush.msra.mxu0 0.0
    %275 = vmatpush.msra.mxu0 0.0
    %276 = vmatpush.msra.mxu0 0.0
    %277 = vmatpush.msra.mxu0 0.0
    %278 = vmatpush.msra.mxu0 0.0
    %279 = vmatpush.msra.mxu0 0.0
    %280 = vmatpush.msra.mxu0 0.0
    %281 = vmatpush.msra.mxu0 0.0
    %282 = vmatpush.msra.mxu0 0.0
    %283 = vmatpush.msra.mxu0 0.0
    %284 = vmatpush.msra.mxu0 0.0
    %285 = vmatpush.msra.mxu0 0.0
    %v286 = vand.u32 %v187, 4294901760
    %287 = vmatpush.msra.mxu0 %v286
    %v288 = vand.u32 %v193, 4294901760
    %v289 = vsub.f32 %v193, %v288
    %v290 = vand.u32 %v289, 4294901760
    %291 = vmatmul.f32.gmra.mxu0 %v290
    %v292 = vpop.f32.mrf.mxu0
    %v293 = vadd.f32 %v269, %v292
    %294 = vdwg.mxu0
    %295 = vmatpush.msra.mxu0 0.0
    %296 = vmatpush.msra.mxu0 0.0
    %297 = vmatpush.msra.mxu0 0.0
    %298 = vmatpush.msra.mxu0 0.0
    %299 = vmatpush.msra.mxu0 0.0
    %300 = vmatpush.msra.mxu0 0.0
    %301 = vmatpush.msra.mxu0 0.0
    %302 = vmatpush.msra.mxu0 0.0
    %303 = vmatpush.msra.mxu0 0.0
    %304 = vmatpush.msra.mxu0 0.0
    %305 = vmatpush.msra.mxu0 0.0
    %306 = vmatpush.msra.mxu0 0.0
    %307 = vmatpush.msra.mxu0 0.0
    %308 = vmatpush.msra.mxu0 0.0
    %309 = vmatpush.msra.mxu0 0.0
    %v310 = vand.u32 %v187, 4294901760
    %v311 = vsub.f32 %v187, %v310
    %v312 = vand.u32 %v311, 4294901760
    %313 = vmatpush.msra.mxu0 %v312
    %v314 = vand.u32 %v193, 4294901760
    %315 = vmatmul.f32.gmra.mxu0 %v314
    %v316 = vpop.f32.mrf.mxu0
    %v317 = vadd.f32 %v293, %v316
    %318 = vdwg.mxu0
    %319 = vmatpush.msra.mxu0 0.0
    %320 = vmatpush.msra.mxu0 0.0
    %321 = vmatpush.msra.mxu0 0.0
    %322 = vmatpush.msra.mxu0 0.0
    %323 = vmatpush.msra.mxu0 0.0
    %324 = vmatpush.msra.mxu0 0.0
    %325 = vmatpush.msra.mxu0 0.0
    %326 = vmatpush.msra.mxu0 0.0
    %327 = vmatpush.msra.mxu0 0.0
    %328 = vmatpush.msra.mxu0 0.0
    %329 = vmatpush.msra.mxu0 0.0
    %330 = vmatpush.msra.mxu0 0.0
    %331 = vmatpush.msra.mxu0 0.0
    %332 = vmatpush.msra.mxu0 0.0
    %333 = vmatpush.msra.mxu0 0.0
    %v334 = vand.u32 %v187, 4294901760
    %335 = vmatpush.msra.mxu0 %v334
    %v336 = vand.u32 %v193, 4294901760
    %337 = vmatmul.f32.gmra.mxu0 %v336
    %v338 = vpop.f32.mrf.mxu0
    %v339 = vadd.f32 %v317, %v338
    %340 = vdwg.mxu0
    %v341 = vmax.f32 %v339, 0.0
    %343 = vset.pattern.permute.xlu0 8
    %344 = vperm.xlu0 %343, %v29
    %v345 = vpop.permute.xlu0 %344
    %348 = vset.pattern.permute.xlu0 8
    %349 = vperm.xlu0 %348, %v30
    %v350 = vpop.permute.xlu0 %349
    %v352 = vsel %vm38, %v29, 0
    %v354 = vsel %vm38, %v30, 0
    %356 = vmatpush.msra.mxu0 0.0
    %357 = vmatpush.msra.mxu0 0.0
    %358 = vmatpush.msra.mxu0 0.0
    %359 = vmatpush.msra.mxu0 0.0
    %360 = vmatpush.msra.mxu0 0.0
    %361 = vmatpush.msra.mxu0 0.0
    %362 = vmatpush.msra.mxu0 0.0
    %363 = vmatpush.msra.mxu0 0.0
    %364 = vmatpush.msra.mxu0 0.0
    %365 = vmatpush.msra.mxu0 0.0
    %366 = vmatpush.msra.mxu0 0.0
    %367 = vmatpush.msra.mxu0 0.0
    %368 = vmatpush.msra.mxu0 0.0
    %369 = vmatpush.msra.mxu0 0.0
    %370 = vmatpush.msra.mxu0 0.0
    %v371 = vand.u32 %v341, 4294901760
    %372 = vmatpush.msra.mxu0 %v371
    %v373 = vand.u32 %v352, 4294901760
    %v374 = vsub.f32 %v352, %v373
    %v375 = vand.u32 %v374, 4294901760
    %v376 = vsub.f32 %v374, %v375
    %v377 = vand.u32 %v376, 4294901760
    %378 = vmatmul.f32.gmra.mxu0 %v377
    %v379 = vpop.f32.mrf.mxu0
    %v380 = vadd.f32 %v345, %v379
    %v381 = vand.u32 %v354, 4294901760
    %v382 = vsub.f32 %v354, %v381
    %v383 = vand.u32 %v382, 4294901760
    %v384 = vsub.f32 %v382, %v383
    %v385 = vand.u32 %v384, 4294901760
    %386 = vmatmul.f32.gmra.mxu0 %v385
    %v387 = vpop.f32.mrf.mxu0
    %v388 = vadd.f32 %v350, %v387
    %389 = vdwg.mxu0
    %390 = vmatpush.msra.mxu0 0.0
    %391 = vmatpush.msra.mxu0 0.0
    %392 = vmatpush.msra.mxu0 0.0
    %393 = vmatpush.msra.mxu0 0.0
    %394 = vmatpush.msra.mxu0 0.0
    %395 = vmatpush.msra.mxu0 0.0
    %396 = vmatpush.msra.mxu0 0.0
    %397 = vmatpush.msra.mxu0 0.0
    %398 = vmatpush.msra.mxu0 0.0
    %399 = vmatpush.msra.mxu0 0.0
    %400 = vmatpush.msra.mxu0 0.0
    %401 = vmatpush.msra.mxu0 0.0
    %402 = vmatpush.msra.mxu0 0.0
    %403 = vmatpush.msra.mxu0 0.0
    %404 = vmatpush.msra.mxu0 0.0
    %v405 = vand.u32 %v341, 4294901760
    %v406 = vsub.f32 %v341, %v405
    %v407 = vand.u32 %v406, 4294901760
    %v408 = vsub.f32 %v406, %v407
    %v409 = vand.u32 %v408, 4294901760
    %410 = vmatpush.msra.mxu0 %v409
    %v411 = vand.u32 %v352, 4294901760
    %412 = vmatmul.f32.gmra.mxu0 %v411
    %v413 = vpop.f32.mrf.mxu0
    %v414 = vadd.f32 %v380, %v413
    %v415 = vand.u32 %v354, 4294901760
    %416 = vmatmul.f32.gmra.mxu0 %v415
    %v417 = vpop.f32.mrf.mxu0
    %v418 = vadd.f32 %v388, %v417
    %419 = vdwg.mxu0
    %420 = vmatpush.msra.mxu0 0.0
    %421 = vmatpush.msra.mxu0 0.0
    %422 = vmatpush.msra.mxu0 0.0
    %423 = vmatpush.msra.mxu0 0.0
    %424 = vmatpush.msra.mxu0 0.0
    %425 = vmatpush.msra.mxu0 0.0
    %426 = vmatpush.msra.mxu0 0.0
    %427 = vmatpush.msra.mxu0 0.0
    %428 = vmatpush.msra.mxu0 0.0
    %429 = vmatpush.msra.mxu0 0.0
    %430 = vmatpush.msra.mxu0 0.0
    %431 = vmatpush.msra.mxu0 0.0
    %432 = vmatpush.msra.mxu0 0.0
    %433 = vmatpush.msra.mxu0 0.0
    %434 = vmatpush.msra.mxu0 0.0
    %v435 = vand.u32 %v341, 4294901760
    %v436 = vsub.f32 %v341, %v435
    %437 = vmatpush.msra.mxu0 %v436
    %v438 = vand.u32 %v352, 4294901760
    %v439 = vsub.f32 %v352, %v438
    %440 = vmatmul.f32.gmra.mxu0 %v439
    %v441 = vpop.f32.mrf.mxu0
    %v442 = vadd.f32 %v414, %v441
    %v443 = vand.u32 %v354, 4294901760
    %v444 = vsub.f32 %v354, %v443
    %445 = vmatmul.f32.gmra.mxu0 %v444
    %v446 = vpop.f32.mrf.mxu0
    %v447 = vadd.f32 %v418, %v446
    %448 = vdwg.mxu0
    %449 = vmatpush.msra.mxu0 0.0
    %450 = vmatpush.msra.mxu0 0.0
    %451 = vmatpush.msra.mxu0 0.0
    %452 = vmatpush.msra.mxu0 0.0
    %453 = vmatpush.msra.mxu0 0.0
    %454 = vmatpush.msra.mxu0 0.0
    %455 = vmatpush.msra.mxu0 0.0
    %456 = vmatpush.msra.mxu0 0.0
    %457 = vmatpush.msra.mxu0 0.0
    %458 = vmatpush.msra.mxu0 0.0
    %459 = vmatpush.msra.mxu0 0.0
    %460 = vmatpush.msra.mxu0 0.0
    %461 = vmatpush.msra.mxu0 0.0
    %462 = vmatpush.msra.mxu0 0.0
    %463 = vmatpush.msra.mxu0 0.0
    %v464 = vand.u32 %v341, 4294901760
    %465 = vmatpush.msra.mxu0 %v464
    %v466 = vand.u32 %v352, 4294901760
    %v467 = vsub.f32 %v352, %v466
    %v468 = vand.u32 %v467, 4294901760
    %469 = vmatmul.f32.gmra.mxu0 %v468
    %v470 = vpop.f32.mrf.mxu0
    %v471 = vadd.f32 %v442, %v470
    %v472 = vand.u32 %v354, 4294901760
    %v473 = vsub.f32 %v354, %v472
    %v474 = vand.u32 %v473, 4294901760
    %475 = vmatmul.f32.gmra.mxu0 %v474
    %v476 = vpop.f32.mrf.mxu0
    %v477 = vadd.f32 %v447, %v476
    %478 = vdwg.mxu0
    %479 = vmatpush.msra.mxu0 0.0
    %480 = vmatpush.msra.mxu0 0.0
    %481 = vmatpush.msra.mxu0 0.0
    %482 = vmatpush.msra.mxu0 0.0
    %483 = vmatpush.msra.mxu0 0.0
    %484 = vmatpush.msra.mxu0 0.0
    %485 = vmatpush.msra.mxu0 0.0
    %486 = vmatpush.msra.mxu0 0.0
    %487 = vmatpush.msra.mxu0 0.0
    %488 = vmatpush.msra.mxu0 0.0
    %489 = vmatpush.msra.mxu0 0.0
    %490 = vmatpush.msra.mxu0 0.0
    %491 = vmatpush.msra.mxu0 0.0
    %492 = vmatpush.msra.mxu0 0.0
    %493 = vmatpush.msra.mxu0 0.0
    %v494 = vand.u32 %v341, 4294901760
    %v495 = vsub.f32 %v341, %v494
    %v496 = vand.u32 %v495, 4294901760
    %497 = vmatpush.msra.mxu0 %v496
    %v498 = vand.u32 %v352, 4294901760
    %499 = vmatmul.f32.gmra.mxu0 %v498
    %v500 = vpop.f32.mrf.mxu0
    %v501 = vadd.f32 %v471, %v500
    %v502 = vand.u32 %v354, 4294901760
    %503 = vmatmul.f32.gmra.mxu0 %v502
    %v504 = vpop.f32.mrf.mxu0
    %v505 = vadd.f32 %v477, %v504
    %506 = vdwg.mxu0
    %507 = vmatpush.msra.mxu0 0.0
    %508 = vmatpush.msra.mxu0 0.0
    %509 = vmatpush.msra.mxu0 0.0
    %510 = vmatpush.msra.mxu0 0.0
    %511 = vmatpush.msra.mxu0 0.0
    %512 = vmatpush.msra.mxu0 0.0
    %513 = vmatpush.msra.mxu0 0.0
    %514 = vmatpush.msra.mxu0 0.0
    %515 = vmatpush.msra.mxu0 0.0
    %516 = vmatpush.msra.mxu0 0.0
    %517 = vmatpush.msra.mxu0 0.0
    %518 = vmatpush.msra.mxu0 0.0
    %519 = vmatpush.msra.mxu0 0.0
    %520 = vmatpush.msra.mxu0 0.0
    %521 = vmatpush.msra.mxu0 0.0
    %v522 = vand.u32 %v341, 4294901760
    %523 = vmatpush.msra.mxu0 %v522
    %v524 = vand.u32 %v352, 4294901760
    %525 = vmatmul.f32.gmra.mxu0 %v524
    %v526 = vpop.f32.mrf.mxu0
    %v527 = vadd.f32 %v501, %v526
    %v528 = vand.u32 %v354, 4294901760
    %529 = vmatmul.f32.gmra.mxu0 %v528
    %v530 = vpop.f32.mrf.mxu0
    %v531 = vadd.f32 %v505, %v530
    %532 = vdwg.mxu0
    %v533 = vmax.f32 %v527, 0.0
    %v534 = vmax.f32 %v531, 0.0
    %536 = vset.pattern.permute.xlu0 16
    %537 = vperm.xlu0 %536, %v31
    %v538 = vpop.permute.xlu0 %537
    %vm540 = vcmask 130048
    %v541 = vsel %vm540, %v31, 0
    %543 = vmatpush.msra.mxu0 0.0
    %544 = vmatpush.msra.mxu0 0.0
    %545 = vmatpush.msra.mxu0 0.0
    %546 = vmatpush.msra.mxu0 0.0
    %547 = vmatpush.msra.mxu0 0.0
    %548 = vmatpush.msra.mxu0 0.0
    %549 = vmatpush.msra.mxu0 0.0
    %550 = vmatpush.msra.mxu0 0.0
    %551 = vmatpush.msra.mxu0 0.0
    %552 = vmatpush.msra.mxu0 0.0
    %553 = vmatpush.msra.mxu0 0.0
    %554 = vmatpush.msra.mxu0 0.0
    %555 = vmatpush.msra.mxu0 0.0
    %556 = vmatpush.msra.mxu0 0.0
    %v557 = vand.u32 %v534, 4294901760
    %558 = vmatpush.msra.mxu0 %v557
    %v559 = vand.u32 %v533, 4294901760
    %560 = vmatpush.msra.mxu0 %v559
    %v561 = vand.u32 %v541, 4294901760
    %v562 = vsub.f32 %v541, %v561
    %v563 = vand.u32 %v562, 4294901760
    %v564 = vsub.f32 %v562, %v563
    %v565 = vand.u32 %v564, 4294901760
    %566 = vmatmul.f32.gmra.mxu0 %v565
    %v567 = vpop.f32.mrf.mxu0
    %v568 = vadd.f32 %v538, %v567
    %569 = vdwg.mxu0
    %570 = vmatpush.msra.mxu0 0.0
    %571 = vmatpush.msra.mxu0 0.0
    %572 = vmatpush.msra.mxu0 0.0
    %573 = vmatpush.msra.mxu0 0.0
    %574 = vmatpush.msra.mxu0 0.0
    %575 = vmatpush.msra.mxu0 0.0
    %576 = vmatpush.msra.mxu0 0.0
    %577 = vmatpush.msra.mxu0 0.0
    %578 = vmatpush.msra.mxu0 0.0
    %579 = vmatpush.msra.mxu0 0.0
    %580 = vmatpush.msra.mxu0 0.0
    %581 = vmatpush.msra.mxu0 0.0
    %582 = vmatpush.msra.mxu0 0.0
    %583 = vmatpush.msra.mxu0 0.0
    %v584 = vand.u32 %v534, 4294901760
    %v585 = vsub.f32 %v534, %v584
    %v586 = vand.u32 %v585, 4294901760
    %v587 = vsub.f32 %v585, %v586
    %v588 = vand.u32 %v587, 4294901760
    %589 = vmatpush.msra.mxu0 %v588
    %v590 = vand.u32 %v533, 4294901760
    %v591 = vsub.f32 %v533, %v590
    %v592 = vand.u32 %v591, 4294901760
    %v593 = vsub.f32 %v591, %v592
    %v594 = vand.u32 %v593, 4294901760
    %595 = vmatpush.msra.mxu0 %v594
    %v596 = vand.u32 %v541, 4294901760
    %597 = vmatmul.f32.gmra.mxu0 %v596
    %v598 = vpop.f32.mrf.mxu0
    %v599 = vadd.f32 %v568, %v598
    %600 = vdwg.mxu0
    %601 = vmatpush.msra.mxu0 0.0
    %602 = vmatpush.msra.mxu0 0.0
    %603 = vmatpush.msra.mxu0 0.0
    %604 = vmatpush.msra.mxu0 0.0
    %605 = vmatpush.msra.mxu0 0.0
    %606 = vmatpush.msra.mxu0 0.0
    %607 = vmatpush.msra.mxu0 0.0
    %608 = vmatpush.msra.mxu0 0.0
    %609 = vmatpush.msra.mxu0 0.0
    %610 = vmatpush.msra.mxu0 0.0
    %611 = vmatpush.msra.mxu0 0.0
    %612 = vmatpush.msra.mxu0 0.0
    %613 = vmatpush.msra.mxu0 0.0
    %614 = vmatpush.msra.mxu0 0.0
    %v615 = vand.u32 %v534, 4294901760
    %v616 = vsub.f32 %v534, %v615
    %617 = vmatpush.msra.mxu0 %v616
    %v618 = vand.u32 %v533, 4294901760
    %v619 = vsub.f32 %v533, %v618
    %620 = vmatpush.msra.mxu0 %v619
    %v621 = vand.u32 %v541, 4294901760
    %v622 = vsub.f32 %v541, %v621
    %623 = vmatmul.f32.gmra.mxu0 %v622
    %v624 = vpop.f32.mrf.mxu0
    %v625 = vadd.f32 %v599, %v624
    %626 = vdwg.mxu0
    %627 = vmatpush.msra.mxu0 0.0
    %628 = vmatpush.msra.mxu0 0.0
    %629 = vmatpush.msra.mxu0 0.0
    %630 = vmatpush.msra.mxu0 0.0
    %631 = vmatpush.msra.mxu0 0.0
    %632 = vmatpush.msra.mxu0 0.0
    %633 = vmatpush.msra.mxu0 0.0
    %634 = vmatpush.msra.mxu0 0.0
    %635 = vmatpush.msra.mxu0 0.0
    %636 = vmatpush.msra.mxu0 0.0
    %637 = vmatpush.msra.mxu0 0.0
    %638 = vmatpush.msra.mxu0 0.0
    %639 = vmatpush.msra.mxu0 0.0
    %640 = vmatpush.msra.mxu0 0.0
    %v641 = vand.u32 %v534, 4294901760
    %642 = vmatpush.msra.mxu0 %v641
    %v643 = vand.u32 %v533, 4294901760
    %644 = vmatpush.msra.mxu0 %v643
    %v645 = vand.u32 %v541, 4294901760
    %v646 = vsub.f32 %v541, %v645
    %v647 = vand.u32 %v646, 4294901760
    %648 = vmatmul.f32.gmra.mxu0 %v647
    %v649 = vpop.f32.mrf.mxu0
    %v650 = vadd.f32 %v625, %v649
    %651 = vdwg.mxu0
    %652 = vmatpush.msra.mxu0 0.0
    %653 = vmatpush.msra.mxu0 0.0
    %654 = vmatpush.msra.mxu0 0.0
    %655 = vmatpush.msra.mxu0 0.0
    %656 = vmatpush.msra.mxu0 0.0
    %657 = vmatpush.msra.mxu0 0.0
    %658 = vmatpush.msra.mxu0 0.0
    %659 = vmatpush.msra.mxu0 0.0
    %660 = vmatpush.msra.mxu0 0.0
    %661 = vmatpush.msra.mxu0 0.0
    %662 = vmatpush.msra.mxu0 0.0
    %663 = vmatpush.msra.mxu0 0.0
    %664 = vmatpush.msra.mxu0 0.0
    %665 = vmatpush.msra.mxu0 0.0
    %v666 = vand.u32 %v534, 4294901760
    %v667 = vsub.f32 %v534, %v666
    %v668 = vand.u32 %v667, 4294901760
    %669 = vmatpush.msra.mxu0 %v668
    %v670 = vand.u32 %v533, 4294901760
    %v671 = vsub.f32 %v533, %v670
    %v672 = vand.u32 %v671, 4294901760
    %673 = vmatpush.msra.mxu0 %v672
    %v674 = vand.u32 %v541, 4294901760
    %675 = vmatmul.f32.gmra.mxu0 %v674
    %v676 = vpop.f32.mrf.mxu0
    %v677 = vadd.f32 %v650, %v676
    %678 = vdwg.mxu0
    %679 = vmatpush.msra.mxu0 0.0
    %680 = vmatpush.msra.mxu0 0.0
    %681 = vmatpush.msra.mxu0 0.0
    %682 = vmatpush.msra.mxu0 0.0
    %683 = vmatpush.msra.mxu0 0.0
    %684 = vmatpush.msra.mxu0 0.0
    %685 = vmatpush.msra.mxu0 0.0
    %686 = vmatpush.msra.mxu0 0.0
    %687 = vmatpush.msra.mxu0 0.0
    %688 = vmatpush.msra.mxu0 0.0
    %689 = vmatpush.msra.mxu0 0.0
    %690 = vmatpush.msra.mxu0 0.0
    %691 = vmatpush.msra.mxu0 0.0
    %692 = vmatpush.msra.mxu0 0.0
    %v693 = vand.u32 %v534, 4294901760
    %694 = vmatpush.msra.mxu0 %v693
    %v695 = vand.u32 %v533, 4294901760
    %696 = vmatpush.msra.mxu0 %v695
    %v697 = vand.u32 %v541, 4294901760
    %698 = vmatmul.f32.gmra.mxu0 %v697
    %v699 = vpop.f32.mrf.mxu0
    %v700 = vadd.f32 %v677, %v699
    %701 = vdwg.mxu0
    %v702 = vmul.f32 %v700, 0.5
    %v703 = vtanh.pop %v702
    %v704 = vadd.f32 %v703, 1.0
    %v705 = vmul.f32 %v704, 0.5
    %706 = vst [vmem:[%s2] sm:$0x1] %v705
    // Predicated region
    $region14: #{cars_model_forward.1} parent=1 // pred_check
      _
    $region15: #{cars_model_forward.1} parent=1 // pred_check_branch
      %708 = sbr.rel (0) target = $region17
    $region16: #{cars_model_forward.1} parent=1 // pred_region
      _
    $region17: #{cars_model_forward.1} parent=1 // pred_fallthru
      _
    // Predicated region
    $region18: #{cars_model_forward.1} parent=1 // pred_check
      _
    $region19: #{cars_model_forward.1} parent=1 // pred_check_branch
      %710 = sbr.rel (0) target = $region21
    $region20: #{cars_model_forward.1} parent=1 // pred_region
      _
    $region21: #{cars_model_forward.1} parent=1 // pred_fallthru
      _
    %711 = vsyncpa [#allocation3], 1

</llo_original>
